<compile_context>
chip_gen: v7x
topology: tpu7x:2x2x1
jax: 0.10.0
libtpu: 0.0.40
codegen_flags: <defaults>
</compile_context>

<pallas_src>
import numpy as np
import jax
import jax.numpy as jnp
from jax.scipy.special import digamma
from jax.experimental import pallas as pl
from jax.experimental.pallas import tpu as pltpu


def _round_up(x, m):
    return (x + m - 1) // m * m


def _bgmm_kernel(mu_ref, sigma_ref, r_ref, t_ref, wq_ref, wl_ref, ws_ref,
                 alpha_ref, log_rho_ref, lse_ref):
    """Fused BGMM scoring.

    a[:, i*D+j] = mu[:, i]  (mu @ R),  b[:, i*D+j] = mu[:, j]  (mu @ T)
    log_rho = (a*b) @ Wq + mu @ Wl + sig^2 @ Ws + alpha + 0.5*sum_d log sig^2_d
    with Wq rows = -0.5*P_k[i,j], Wl rows = P_k m_k, Ws rows = -0.5*diag(P_k).
    Padded classes carry alpha = -1e30 so the logsumexp ignores them.
    """
    mu = mu_ref[...]                        # (TB, D) f32
    sigma = sigma_ref[...]                  # (TB, D) f32
    sig2 = sigma * sigma

    # Lane-dense replication of mu via tiny 0/1 selection matmuls (MXU);
    # exact in f32 and avoids any cross-lane relayout of a (TB, D, D) tensor.
    a = jnp.dot(mu, r_ref[...], preferred_element_type=jnp.float32)   # (TB, F2)
    b = jnp.dot(mu, t_ref[...], preferred_element_type=jnp.float32)   # (TB, F2)
    outer = a * b                                                      # (TB, F2)

    cdt = wq_ref.dtype
    log_rho = (
        jnp.dot(outer.astype(cdt), wq_ref[...], preferred_element_type=jnp.float32)
        + jnp.dot(mu.astype(cdt), wl_ref[...], preferred_element_type=jnp.float32)
        + jnp.dot(sig2.astype(cdt), ws_ref[...], preferred_element_type=jnp.float32)
        + alpha_ref[...]                                               # f32 add
    )
    # k-independent per-row term (cancels in the softmax, needed in log_rho).
    rowlog = 0.5 * jnp.sum(jnp.log(sig2), axis=-1, keepdims=True)      # (TB, 1)
    log_rho = log_rho + rowlog
    log_rho_ref[...] = log_rho

    # logsumexp over classes; padded classes have log_rho ~ -1e30 -> exp == 0.
    m = jnp.max(log_rho, axis=-1, keepdims=True)
    lse_ref[...] = m + jnp.log(jnp.sum(jnp.exp(log_rho - m), axis=-1,
                                       keepdims=True))


class BGMM:
    """JAX/Pallas port of padertorch BGMM (inference forward)."""

    def __init__(self, feature_size, num_classes, locs_init_std=1.0,
                 scales_init=1.0, alpha_0=0.1, virtual_dataset_size=1000,
                 momentum=0.99, seed=123):
        self.feature_size = feature_size
        self.num_classes = num_classes
        self.virtual_dataset_size = virtual_dataset_size
        self.momentum = momentum
        self.kappa_0 = 1.0
        self.nu_0 = float(feature_size)
        self.alpha_0 = alpha_0
        self.scatter_prior = (
            jnp.eye(feature_size, dtype=jnp.float32) * locs_init_std)

        count_init = np.ones(num_classes)
        count_init = count_init / count_init.sum(-1) * virtual_dataset_size
        self.counts = jnp.asarray(count_init, dtype=jnp.float32)

        key = jax.random.PRNGKey(seed)
        locs_init = locs_init_std * jax.random.normal(
            key, (num_classes, feature_size), dtype=jnp.float32)
        self.unnormalized_locs = locs_init * self.counts[:, None]

        scales = jnp.broadcast_to(
            jnp.eye(feature_size, dtype=jnp.float32) * scales_init,
            (num_classes, feature_size, feature_size))
        self.unnormalized_scatter = (
            scales @ jnp.swapaxes(scales, -1, -2)
            + locs_init[:, :, None] * locs_init[:, None, :]
        ) * self.counts[:, None, None]

    # ---- buffer-derived properties (mirror the torch module) ----
    @property
    def class_probs(self):
        c = self.alpha_0 + self.counts
        return c / c.sum()

    @property
    def log_class_probs(self):
        return jnp.log(self.class_probs + 1e-9)

    @property
    def locs(self):
        return self.unnormalized_locs / (self.kappa_0 + self.counts[:, None])

    @property
    def covs(self):
        locs = self.unnormalized_locs / self.counts[:, None]
        scatter = (self.unnormalized_scatter
                   - locs[:, :, None] * self.unnormalized_locs[:, None, :])
        return (self.nu_0 * self.scatter_prior + scatter
                + self.nu_0 * self.counts[:, None, None]
                / (self.nu_0 + self.counts[:, None, None])
                * locs[:, :, None] * locs[:, None, :]
                ) / (self.nu_0 + self.counts[:, None, None])

    # ---- forward ----
    def forward(self, loc, scale, *, batch_tile=None, compute_dtype=jnp.float32):
        """loc, scale: (B, D) float32. Returns (log_class_posterior, log_rho)."""
        D = self.feature_size
        K = self.num_classes
        B = loc.shape[0]
        assert loc.shape == (B, D) and scale.shape == (B, D)

        # ---- per-class glue (tiny; no clean Pallas equivalent for inv/slogdet) ----
        covs = self.covs                                   # (K, D, D)
        locs = self.locs                                   # (K, D)
        prec = jnp.linalg.inv(covs)                        # (K, D, D)
        logdet = jnp.linalg.slogdet(covs)[1]               # (K,)
        v = jnp.einsum('kde,ke->kd', prec, locs)           # P_k m_k       (K, D)
        c = jnp.einsum('kd,kd->k', v, locs)                # m_k^T P_k m_k (K,)
        diagp = jnp.diagonal(prec, axis1=-2, axis2=-1)     # (K, D)

        term1 = digamma(self.alpha_0 + self.counts)        # (K,)
        d_range = jnp.arange(D, dtype=jnp.float32)
        term2 = (jnp.sum(
            digamma((self.nu_0 + self.counts[:, None] - d_range) / 2.0),
            axis=-1) - jnp.log(self.nu_0 + self.counts))   # (K,)

        # All per-class constants of the KL folded into alpha (always f32).
        alpha = (term1 + 0.5 * term2
                 - 0.5 * D / (self.kappa_0 + self.counts)
                 - 0.5 * (c - D + logdet))                 # (K,)

        # ---- host-prepared constant matrices (fetched once by the pipeline) ----
        F = D * D
        F2 = _round_up(F, 128)
        K_pad = _round_up(K, 128)

        cols = np.arange(F)
        R_np = np.zeros((D, F2), np.float32); R_np[cols // D, cols] = 1.0
        T_np = np.zeros((D, F2), np.float32); T_np[cols % D, cols] = 1.0
        R = jnp.asarray(R_np)                                         # (D, F2)
        T = jnp.asarray(T_np)                                         # (D, F2)

        Wq = -0.5 * jnp.transpose(prec, (1, 2, 0)).reshape(F, K)      # (D^2, K)
        Wq = jnp.pad(Wq, ((0, F2 - F), (0, K_pad - K))).astype(compute_dtype)
        Wl = jnp.pad(v.T, ((0, 0), (0, K_pad - K))).astype(compute_dtype)
        Ws = jnp.pad(-0.5 * diagp.T, ((0, 0), (0, K_pad - K))).astype(compute_dtype)
        alpha_pad = jnp.pad(alpha.astype(jnp.float32), (0, K_pad - K),
                            constant_values=-1e30)[None, :]           # (1, K_pad)

        # ---- batch tiling: big tiles for large B, >= 2 steps for medium B ----
        if batch_tile is None:
            if B >= 4096:
                batch_tile = 1024
            elif B >= 1024:
                batch_tile = 512
            else:
                # split into two tiles so the "parallel" grid axis can use
                # both v7x TensorCores; keep sublane (8) alignment.
                batch_tile = max(8, _round_up(-(-B // 2), 8))
        batch_tile = _round_up(batch_tile, 8)
        Bp = _round_up(B, batch_tile)

        mu = loc.astype(jnp.float32)
        sigma = scale.astype(jnp.float32)
        if Bp != B:
            mu = jnp.pad(mu, ((0, Bp - B), (0, 0)))
            sigma = jnp.pad(sigma, ((0, Bp - B), (0, 0)), constant_values=1.0)

        grid = (Bp // batch_tile,)
        out_shape = (jax.ShapeDtypeStruct((Bp, K_pad), jnp.float32),   # log_rho
                     jax.ShapeDtypeStruct((Bp, 1), jnp.float32))       # lse
        log_rho, lse = pl.pallas_call(
            _bgmm_kernel,
            out_shape=out_shape,
            grid=grid,
            in_specs=[
                pl.BlockSpec((batch_tile, D), lambda i: (i, 0)),       # mu
                pl.BlockSpec((batch_tile, D), lambda i: (i, 0)),       # sigma
                pl.BlockSpec((D, F2), lambda i: (0, 0)),               # R
                pl.BlockSpec((D, F2), lambda i: (0, 0)),               # T
                pl.BlockSpec((F2, K_pad), lambda i: (0, 0)),           # Wq
                pl.BlockSpec((D, K_pad), lambda i: (0, 0)),            # Wl
                pl.BlockSpec((D, K_pad), lambda i: (0, 0)),            # Ws
                pl.BlockSpec((1, K_pad), lambda i: (0, 0)),            # alpha
            ],
            out_specs=[
                pl.BlockSpec((batch_tile, K_pad), lambda i: (i, 0)),
                pl.BlockSpec((batch_tile, 1), lambda i: (i, 0)),
            ],
            compiler_params=pltpu.CompilerParams(
                dimension_semantics=("parallel",),
                vmem_limit_bytes=32 * 1024 * 1024),
        )(mu, sigma, R, T, Wq, Wl, Ws, alpha_pad)

        log_rho_out = log_rho[:B, :K]
        log_post = log_rho_out - lse[:B]      # half the kernel writeback vs v2

        # TODO(synk): training-mode EMA updates of counts / unnormalized_locs /
        # unnormalized_scatter (stateful buffer mutation) are not applied here;
        # the returned (log_class_posterior, log_rho) do not depend on them.
        return log_post, log_rho_out


def reference_forward(bgmm, loc, scale):
    """Pure-JAX reference reproducing the torch forward (eval mode)."""
    D = bgmm.feature_size
    covs = bgmm.covs
    locs = bgmm.locs
    prec = jnp.linalg.inv(covs)
    logdet = jnp.linalg.slogdet(covs)[1]

    sig2 = scale ** 2
    diff = loc[:, None, :] - locs[None, :, :]                        # (B, K, D)
    quad = jnp.einsum('bkd,kde,bke->bk', diff, prec, diff)           # (B, K)
    tr = jnp.einsum('bd,kd->bk', sig2,
                    jnp.diagonal(prec, axis1=-2, axis2=-1))          # (B, K)
    kl = 0.5 * (tr + quad - D + logdet[None, :]
                - jnp.sum(jnp.log(sig2), axis=-1, keepdims=True))    # (B, K)

    term1 = digamma(bgmm.alpha_0 + bgmm.counts)
    d_range = jnp.arange(D, dtype=jnp.float32)
    term2 = (jnp.sum(digamma((bgmm.nu_0 + bgmm.counts[:, None] - d_range) / 2.0),
                     axis=-1) - jnp.log(bgmm.nu_0 + bgmm.counts))
    term3 = kl + 0.5 * D / (bgmm.kappa_0 + bgmm.counts)
    log_rho = term1 + 0.5 * term2 - term3
    log_post = jax.nn.log_softmax(log_rho, axis=-1)
    return log_post, log_rho


if __name__ == "__main__":
    feature_size, num_classes, batch = 16, 4, 20   # batch not a multiple of 8
                                                   # to exercise the padding path
    bgmm = BGMM(feature_size, num_classes)

    key = jax.random.PRNGKey(0)
    k1, k2 = jax.random.split(key)
    qz_loc = jax.random.normal(k1, (batch, feature_size), dtype=jnp.float32)
    qz_scale = (jax.nn.softplus(
        jax.random.normal(k2, (batch, feature_size), dtype=jnp.float32)) + 0.1)

    log_post, log_rho = bgmm.forward(qz_loc, qz_scale)
    jax.block_until_ready((log_post, log_rho))

    ref_post, ref_rho = reference_forward(bgmm, qz_loc, qz_scale)
    np.testing.assert_allclose(np.asarray(log_rho), np.asarray(ref_rho),
                               rtol=1e-3, atol=1e-3)
    np.testing.assert_allclose(np.asarray(log_post), np.asarray(ref_post),
                               rtol=1e-3, atol=1e-3)

    print("KERNEL_OK")
</pallas_src>

<mosaic_0001>
module attributes {stable_mosaic.version = 11 : i64} {
  func.func @_bgmm_kernel(%arg0: i32, %arg1: memref<16x16xf32, #tpu.memory_space<vmem>>, %arg2: memref<16x16xf32, #tpu.memory_space<vmem>>, %arg3: memref<16x256xf32, #tpu.memory_space<vmem>>, %arg4: memref<16x256xf32, #tpu.memory_space<vmem>>, %arg5: memref<256x128xf32, #tpu.memory_space<vmem>>, %arg6: memref<16x128xf32, #tpu.memory_space<vmem>>, %arg7: memref<16x128xf32, #tpu.memory_space<vmem>>, %arg8: memref<1x128xf32, #tpu.memory_space<vmem>>, %arg9: memref<16x128xf32, #tpu.memory_space<vmem>>, %arg10: memref<16x1xf32, #tpu.memory_space<vmem>>) attributes {dimension_semantics = [#tpu.dimension_semantics<parallel>], iteration_bounds = array<i64: 2>, scalar_prefetch = 0 : i64, scratch_operands = 0 : i64, tpu.core_type = #tpu.core_type<tc>, window_params = [{transform_indices = @transform_0, window_bounds = array<i64: 16, 16>}, {transform_indices = @transform_1, window_bounds = array<i64: 16, 16>}, {pipeline_mode = #tpu.pipeline_mode<synchronous>, transform_indices = @transform_2, window_bounds = array<i64: 16, 256>}, {pipeline_mode = #tpu.pipeline_mode<synchronous>, transform_indices = @transform_3, window_bounds = array<i64: 16, 256>}, {pipeline_mode = #tpu.pipeline_mode<synchronous>, transform_indices = @transform_4, window_bounds = array<i64: 256, 128>}, {pipeline_mode = #tpu.pipeline_mode<synchronous>, transform_indices = @transform_5, window_bounds = array<i64: 16, 128>}, {pipeline_mode = #tpu.pipeline_mode<synchronous>, transform_indices = @transform_6, window_bounds = array<i64: 16, 128>}, {pipeline_mode = #tpu.pipeline_mode<synchronous>, transform_indices = @transform_7, window_bounds = array<i64: 1, 128>}, {transform_indices = @transform_8, window_bounds = array<i64: 16, 128>}, {transform_indices = @transform_9, window_bounds = array<i64: 16, 1>}]} {
    %c0 = arith.constant 0 : index
    %c0_0 = arith.constant 0 : index
    %0 = vector.load %arg1[%c0, %c0_0] : memref<16x16xf32, #tpu.memory_space<vmem>>, vector<16x16xf32>
    %c0_1 = arith.constant 0 : index
    %c0_2 = arith.constant 0 : index
    %1 = vector.load %arg2[%c0_1, %c0_2] : memref<16x16xf32, #tpu.memory_space<vmem>>, vector<16x16xf32>
    %2 = arith.mulf %1, %1 : vector<16x16xf32>
    %c0_3 = arith.constant 0 : index
    %c0_4 = arith.constant 0 : index
    %3 = vector.load %arg3[%c0_3, %c0_4] : memref<16x256xf32, #tpu.memory_space<vmem>>, vector<16x256xf32>
    %cst = arith.constant dense<0.000000e+00> : vector<16x256xf32>
    %4 = tpu.matmul %0, %3, %cst {dimension_numbers = #tpu.dot_dimension_numbers<[1], [0], [0], [1], [0, 0, 1, 1], [], []>} : vector<16x16xf32>, vector<16x256xf32>, vector<16x256xf32> -> vector<16x256xf32>
    %c0_5 = arith.constant 0 : index
    %c0_6 = arith.constant 0 : index
    %5 = vector.load %arg4[%c0_5, %c0_6] : memref<16x256xf32, #tpu.memory_space<vmem>>, vector<16x256xf32>
    %cst_7 = arith.constant dense<0.000000e+00> : vector<16x256xf32>
    %6 = tpu.matmul %0, %5, %cst_7 {dimension_numbers = #tpu.dot_dimension_numbers<[1], [0], [0], [1], [0, 0, 1, 1], [], []>} : vector<16x16xf32>, vector<16x256xf32>, vector<16x256xf32> -> vector<16x256xf32>
    %7 = arith.mulf %4, %6 : vector<16x256xf32>
    %c0_8 = arith.constant 0 : index
    %c0_9 = arith.constant 0 : index
    %8 = vector.load %arg5[%c0_8, %c0_9] : memref<256x128xf32, #tpu.memory_space<vmem>>, vector<256x128xf32>
    %cst_10 = arith.constant dense<0.000000e+00> : vector<16x128xf32>
    %9 = tpu.matmul %7, %8, %cst_10 {dimension_numbers = #tpu.dot_dimension_numbers<[1], [0], [0], [1], [0, 0, 1, 1], [], []>} : vector<16x256xf32>, vector<256x128xf32>, vector<16x128xf32> -> vector<16x128xf32>
    %c0_11 = arith.constant 0 : index
    %c0_12 = arith.constant 0 : index
    %10 = vector.load %arg6[%c0_11, %c0_12] : memref<16x128xf32, #tpu.memory_space<vmem>>, vector<16x128xf32>
    %cst_13 = arith.constant dense<0.000000e+00> : vector<16x128xf32>
    %11 = tpu.matmul %0, %10, %cst_13 {dimension_numbers = #tpu.dot_dimension_numbers<[1], [0], [0], [1], [0, 0, 1, 1], [], []>} : vector<16x16xf32>, vector<16x128xf32>, vector<16x128xf32> -> vector<16x128xf32>
    %12 = arith.addf %9, %11 : vector<16x128xf32>
    %c0_14 = arith.constant 0 : index
    %c0_15 = arith.constant 0 : index
    %13 = vector.load %arg7[%c0_14, %c0_15] : memref<16x128xf32, #tpu.memory_space<vmem>>, vector<16x128xf32>
    %cst_16 = arith.constant dense<0.000000e+00> : vector<16x128xf32>
    %14 = tpu.matmul %2, %13, %cst_16 {dimension_numbers = #tpu.dot_dimension_numbers<[1], [0], [0], [1], [0, 0, 1, 1], [], []>} : vector<16x16xf32>, vector<16x128xf32>, vector<16x128xf32> -> vector<16x128xf32>
    %15 = arith.addf %12, %14 : vector<16x128xf32>
    %c0_17 = arith.constant 0 : index
    %c0_18 = arith.constant 0 : index
    %16 = vector.load %arg8[%c0_17, %c0_18] : memref<1x128xf32, #tpu.memory_space<vmem>>, vector<1x128xf32>
    %17 = vector.broadcast %16 : vector<1x128xf32> to vector<16x128xf32>
    %18 = arith.addf %15, %17 : vector<16x128xf32>
    %19 = math.log %2 : vector<16x16xf32>
    %cst_19 = arith.constant dense<0.000000e+00> : vector<16xf32>
    %20 = vector.multi_reduction <add>, %19, %cst_19 [1] : vector<16x16xf32> to vector<16xf32>
    %21 = vector.shape_cast %20 : vector<16xf32> to vector<16x1xf32>
    %cst_20 = arith.constant 5.000000e-01 : f32
    %22 = vector.broadcast %cst_20 : f32 to vector<16x1xf32>
    %23 = arith.mulf %22, %21 : vector<16x1xf32>
    %24 = vector.broadcast %23 : vector<16x1xf32> to vector<16x128xf32>
    %25 = arith.addf %18, %24 : vector<16x128xf32>
    %c0_21 = arith.constant 0 : index
    %c0_22 = arith.constant 0 : index
    %26 = vector.load %arg9[%c0_21, %c0_22] : memref<16x128xf32, #tpu.memory_space<vmem>>, vector<16x128xf32>
    tpu.vector_store %arg9[%c0_21, %c0_22], %25 {strides = array<i32>} : memref<16x128xf32, #tpu.memory_space<vmem>>, vector<16x128xf32>,
    %cst_23 = arith.constant dense<0xFF800000> : vector<16xf32>
    %27 = vector.multi_reduction <maximumf>, %25, %cst_23 [1] : vector<16x128xf32> to vector<16xf32>
    %28 = vector.shape_cast %27 : vector<16xf32> to vector<16x1xf32>
    %29 = vector.broadcast %28 : vector<16x1xf32> to vector<16x128xf32>
    %30 = arith.subf %25, %29 : vector<16x128xf32>
    %31 = math.exp %30 : vector<16x128xf32>
    %cst_24 = arith.constant dense<0.000000e+00> : vector<16xf32>
    %32 = vector.multi_reduction <add>, %31, %cst_24 [1] : vector<16x128xf32> to vector<16xf32>
    %33 = vector.shape_cast %32 : vector<16xf32> to vector<16x1xf32>
    %34 = math.log %33 : vector<16x1xf32>
    %35 = arith.addf %28, %34 : vector<16x1xf32>
    %c0_25 = arith.constant 0 : index
    %c0_26 = arith.constant 0 : index
    %36 = vector.load %arg10[%c0_25, %c0_26] : memref<16x1xf32, #tpu.memory_space<vmem>>, vector<16x1xf32>
    tpu.vector_store %arg10[%c0_25, %c0_26], %35 {strides = array<i32>} : memref<16x1xf32, #tpu.memory_space<vmem>>, vector<16x1xf32>,
    return
  }
  func.func @transform_0(%arg0: i32) -> (i32, i32) {
    %c0_i32 = arith.constant 0 : i32
    %c0_i32_0 = arith.constant 0 : i32
    return %arg0, %c0_i32 : i32, i32
  }
  func.func @transform_1(%arg0: i32) -> (i32, i32) {
    %c0_i32 = arith.constant 0 : i32
    %c0_i32_0 = arith.constant 0 : i32
    return %arg0, %c0_i32 : i32, i32
  }
  func.func @transform_2(%arg0: i32) -> (i32, i32) {
    %c0_i32 = arith.constant 0 : i32
    %c0_i32_0 = arith.constant 0 : i32
    %c0_i32_1 = arith.constant 0 : i32
    return %c0_i32, %c0_i32_0 : i32, i32
  }
  func.func @transform_3(%arg0: i32) -> (i32, i32) {
    %c0_i32 = arith.constant 0 : i32
    %c0_i32_0 = arith.constant 0 : i32
    %c0_i32_1 = arith.constant 0 : i32
    return %c0_i32, %c0_i32_0 : i32, i32
  }
  func.func @transform_4(%arg0: i32) -> (i32, i32) {
    %c0_i32 = arith.constant 0 : i32
    %c0_i32_0 = arith.constant 0 : i32
    %c0_i32_1 = arith.constant 0 : i32
    return %c0_i32, %c0_i32_0 : i32, i32
  }
  func.func @transform_5(%arg0: i32) -> (i32, i32) {
    %c0_i32 = arith.constant 0 : i32
    %c0_i32_0 = arith.constant 0 : i32
    %c0_i32_1 = arith.constant 0 : i32
    return %c0_i32, %c0_i32_0 : i32, i32
  }
  func.func @transform_6(%arg0: i32) -> (i32, i32) {
    %c0_i32 = arith.constant 0 : i32
    %c0_i32_0 = arith.constant 0 : i32
    %c0_i32_1 = arith.constant 0 : i32
    return %c0_i32, %c0_i32_0 : i32, i32
  }
  func.func @transform_7(%arg0: i32) -> (i32, i32) {
    %c0_i32 = arith.constant 0 : i32
    %c0_i32_0 = arith.constant 0 : i32
    %c0_i32_1 = arith.constant 0 : i32
    return %c0_i32, %c0_i32_0 : i32, i32
  }
  func.func @transform_8(%arg0: i32) -> (i32, i32) {
    %c0_i32 = arith.constant 0 : i32
    %c0_i32_0 = arith.constant 0 : i32
    return %arg0, %c0_i32 : i32, i32
  }
  func.func @transform_9(%arg0: i32) -> (i32, i32) {
    %c0_i32 = arith.constant 0 : i32
    %c0_i32_0 = arith.constant 0 : i32
    return %arg0, %c0_i32 : i32, i32
  }
}

</mosaic_0001>

<llo_original>
// kernel: tpu_custom_call.1
$region0: #{tpu_custom_call.1}
  #allocation0 [shape = 'u32[]', space=smem, size = 0x4, offset = 0x4, fixed_abs, tag = 'smem constant byte address 0x4 - core index']
  #allocation1 [shape = 'u32[144,128]{1,0:T(1,128)}', space=vmem, size = 0x12000, scoped, tag = 'internal scratch']
  %s0 = inlined_call_operand.vmem [shape: f32[32,16], index: 0, kind: input, shape index: {}]
  %s1 = inlined_call_operand.vmem [shape: f32[32,16], index: 1, kind: input, shape index: {}]
  %s2 = inlined_call_operand.vmem [shape: f32[16,256], index: 2, kind: input, shape index: {}]
  %s3 = inlined_call_operand.vmem [shape: f32[16,256], index: 3, kind: input, shape index: {}]
  %s4 = inlined_call_operand.hbm [shape: f32[256,128], index: 4, kind: input, shape index: {}]
  %s5 = inlined_call_operand.vmem [shape: f32[16,128], index: 5, kind: input, shape index: {}]
  %s6 = inlined_call_operand.vmem [shape: f32[16,128], index: 6, kind: input, shape index: {}]
  %s7 = inlined_call_operand.vmem [shape: f32[1,128], index: 7, kind: input, shape index: {}]
  %s8 = inlined_call_operand.hbm [shape: f32[32,128], index: 8, kind: output, shape index: {0}]
  %s9 = inlined_call_operand.vmem [shape: f32[32,1], index: 9, kind: output, shape index: {1}]
  %10 = xla_tuple %s8, %s9
  %s11 = sld [smem:[#allocation0]]
  $region77: #{tpu_custom_call.1} parent=0
    _
  %s13 = ssub.s32 1, %s11
  %s14 = scalar_select 0, %s13, %s11
  $region1: #{tpu_custom_call.1} parent=0
    #allocation2 [shape = 'u8[131072]{0}', space=vmem, size = 0x20000, scoped, tag = 'input window, operand 4, single buffered']
    #allocation3 [shape = 's32[2]{0}', space=sflag, size = 0x8, scoped, tag = 'scoped memory for tpu_custom_call.1']
    #allocation4 [shape = 's32[2]{0}', space=sflag, size = 0x8, scoped, tag = 'scoped memory for tpu_custom_call.1']
    #allocation5 [shape = 'u8[16384]{0}', space=vmem, size = 0x4000, scoped, tag = 'output window, operand 0']
    %15 = vsyncpa [#allocation3], 0
    %16 = vsyncpa [#allocation4], 0
    %s17 = scalar_lea.sflag [#allocation4], 1
    %18 = vsyncpa %s17, 0
    loop: start=0, step=1, limit=4
    $region2: #{tpu_custom_call.1} parent=1 // loop_pre_header
      _
    $region3: #{tpu_custom_call.1} parent=1 // loop_header
      %s20 = sphi 0, %s24
      %p21 = scmp.ge.s32.totalorder %s20, 4
      %s30 = sphi 0, %s32
      %s33 = sphi 0, %s30
      %s34 = sphi 0, %s33
      %s50 = sphi 0, %s34
      %s56 = sphi 0, %s58
      %s59 = sphi 0, %s56
      %s60 = sphi 0, %s59
      %s76 = sphi 0, %s60
      %s80 = sphi 0, %s80
      %s82 = sphi 0, %s80
      %s83 = sphi 0, %s82
      %s97 = sphi 0, %s83
      %s101 = sphi 0, %s101
      %s103 = sphi 0, %s101
      %s104 = sphi 0, %s103
      %s118 = sphi 0, %s104
      %s122 = sphi 0, %s122
      %s124 = sphi 0, %s122
      %s125 = sphi 0, %s124
      %s139 = sphi 0, %s125
      %s143 = sphi 0, %s143
      %s145 = sphi 0, %s143
      %s146 = sphi 0, %s145
      %s160 = sphi 0, %s146
      %s164 = sphi 0, %s164
      %s166 = sphi 0, %s164
      %s167 = sphi 0, %s166
      %s181 = sphi 0, %s167
      %s185 = sphi 0, %s185
      %s187 = sphi 0, %s185
      %s188 = sphi 0, %s187
      %s202 = sphi 0, %s188
      %s208 = sphi 0, %s210
      %s211 = sphi 0, %s208
      %s212 = sphi 0, %s211
      %s228 = sphi 0, %s212
      %s234 = sphi 0, %s236
      %s237 = sphi 0, %s234
      %s238 = sphi 0, %s237
      %s254 = sphi 0, %s238
    $region4: #{tpu_custom_call.1} parent=1 // loop_header_branch
      %23 = sbr.rel (%p21) target = $region8
    $region5: #{tpu_custom_call.1} parent=1 // loop_body
      %s25 = ssub.s32 %s20, 1
      %s26 = ssub.s32 %s20, 2
      %s27 = sadd.s32 %s20, 1
      %s28 = ssub.s32 %s20, %s27
      %p29 = scmp.eq.s32.totalorder %s28, 0
      %s31 = sadd.s32 %s30, 1
      %s32 = scalar_select %p29, %s30, %s31
      %p35 = pneg %p29
      %p36 = scmp.eq.s32.totalorder %s20, 1
      %p37 = por %p35, %p36
      %p38 = scmp.ne.s32.totalorder %s30, %s33
      %p39 = scmp.eq.s32.totalorder %s20, 0
      %p40 = por %p38, %p39
      %p41 = scmp.ne.s32.totalorder %s30, %s33
      %p42 = scmp.eq.s32.totalorder %s25, 1
      %p43 = por %p41, %p42
      %p44 = scmp.ne.s32.totalorder %s33, %s34
      %p45 = scmp.eq.s32.totalorder %s25, 0
      %p46 = por %p44, %p45
      %p47 = scmp.ne.s32.totalorder %s33, %s34
      %p48 = scmp.eq.s32.totalorder %s26, 1
      %p49 = por %p47, %p48
      %p51 = scmp.ne.s32.totalorder %s34, %s50
      %p52 = scmp.eq.s32.totalorder %s26, 0
      %p53 = por %p51, %p52
      %s54 = ssub.s32 %s20, %s27
      %p55 = scmp.eq.s32.totalorder %s54, 0
      %s57 = sadd.s32 %s56, 1
      %s58 = scalar_select %p55, %s56, %s57
      %p61 = pneg %p55
      %p62 = scmp.eq.s32.totalorder %s20, 1
      %p63 = por %p61, %p62
      %p64 = scmp.ne.s32.totalorder %s56, %s59
      %p65 = scmp.eq.s32.totalorder %s20, 0
      %p66 = por %p64, %p65
      %p67 = scmp.ne.s32.totalorder %s56, %s59
      %p68 = scmp.eq.s32.totalorder %s25, 1
      %p69 = por %p67, %p68
      %p70 = scmp.ne.s32.totalorder %s59, %s60
      %p71 = scmp.eq.s32.totalorder %s25, 0
      %p72 = por %p70, %p71
      %p73 = scmp.ne.s32.totalorder %s59, %s60
      %p74 = scmp.eq.s32.totalorder %s26, 1
      %p75 = por %p73, %p74
      %p77 = scmp.ne.s32.totalorder %s60, %s76
      %p78 = scmp.eq.s32.totalorder %s26, 0
      %p79 = por %p77, %p78
      %s81 = sadd.s32 %s80, 1
      %p84 = scmp.eq.s32.totalorder %s20, 1
      %p85 = scmp.ne.s32.totalorder %s80, %s82
      %p86 = scmp.eq.s32.totalorder %s20, 0
      %p87 = por %p85, %p86
      %p88 = scmp.ne.s32.totalorder %s80, %s82
      %p89 = scmp.eq.s32.totalorder %s25, 1
      %p90 = por %p88, %p89
      %p91 = scmp.ne.s32.totalorder %s82, %s83
      %p92 = scmp.eq.s32.totalorder %s25, 0
      %p93 = por %p91, %p92
      %p94 = scmp.ne.s32.totalorder %s82, %s83
      %p95 = scmp.eq.s32.totalorder %s26, 1
      %p96 = por %p94, %p95
      %p98 = scmp.ne.s32.totalorder %s83, %s97
      %p99 = scmp.eq.s32.totalorder %s26, 0
      %p100 = por %p98, %p99
      %s102 = sadd.s32 %s101, 1
      %p105 = scmp.eq.s32.totalorder %s20, 1
      %p106 = scmp.ne.s32.totalorder %s101, %s103
      %p107 = scmp.eq.s32.totalorder %s20, 0
      %p108 = por %p106, %p107
      %p109 = scmp.ne.s32.totalorder %s101, %s103
      %p110 = scmp.eq.s32.totalorder %s25, 1
      %p111 = por %p109, %p110
      %p112 = scmp.ne.s32.totalorder %s103, %s104
      %p113 = scmp.eq.s32.totalorder %s25, 0
      %p114 = por %p112, %p113
      %p115 = scmp.ne.s32.totalorder %s103, %s104
      %p116 = scmp.eq.s32.totalorder %s26, 1
      %p117 = por %p115, %p116
      %p119 = scmp.ne.s32.totalorder %s104, %s118
      %p120 = scmp.eq.s32.totalorder %s26, 0
      %p121 = por %p119, %p120
      %s123 = sadd.s32 %s122, 1
      %p126 = scmp.eq.s32.totalorder %s20, 1
      %p127 = scmp.ne.s32.totalorder %s122, %s124
      %p128 = scmp.eq.s32.totalorder %s20, 0
      %p129 = por %p127, %p128
      %p130 = scmp.ne.s32.totalorder %s122, %s124
      %p131 = scmp.eq.s32.totalorder %s25, 1
      %p132 = por %p130, %p131
      %p133 = scmp.ne.s32.totalorder %s124, %s125
      %p134 = scmp.eq.s32.totalorder %s25, 0
      %p135 = por %p133, %p134
      %p136 = scmp.ne.s32.totalorder %s124, %s125
      %p137 = scmp.eq.s32.totalorder %s26, 1
      %p138 = por %p136, %p137
      %p140 = scmp.ne.s32.totalorder %s125, %s139
      %p141 = scmp.eq.s32.totalorder %s26, 0
      %p142 = por %p140, %p141
      %s144 = sadd.s32 %s143, 1
      %p147 = scmp.eq.s32.totalorder %s20, 1
      %p148 = scmp.ne.s32.totalorder %s143, %s145
      %p149 = scmp.eq.s32.totalorder %s20, 0
      %p150 = por %p148, %p149
      %p151 = scmp.ne.s32.totalorder %s143, %s145
      %p152 = scmp.eq.s32.totalorder %s25, 1
      %p153 = por %p151, %p152
      %p154 = scmp.ne.s32.totalorder %s145, %s146
      %p155 = scmp.eq.s32.totalorder %s25, 0
      %p156 = por %p154, %p155
      %p157 = scmp.ne.s32.totalorder %s145, %s146
      %p158 = scmp.eq.s32.totalorder %s26, 1
      %p159 = por %p157, %p158
      %p161 = scmp.ne.s32.totalorder %s146, %s160
      %p162 = scmp.eq.s32.totalorder %s26, 0
      %p163 = por %p161, %p162
      %s165 = sadd.s32 %s164, 1
      %p168 = scmp.eq.s32.totalorder %s20, 1
      %p169 = scmp.ne.s32.totalorder %s164, %s166
      %p170 = scmp.eq.s32.totalorder %s20, 0
      %p171 = por %p169, %p170
      %p172 = scmp.ne.s32.totalorder %s164, %s166
      %p173 = scmp.eq.s32.totalorder %s25, 1
      %p174 = por %p172, %p173
      %p175 = scmp.ne.s32.totalorder %s166, %s167
      %p176 = scmp.eq.s32.totalorder %s25, 0
      %p177 = por %p175, %p176
      %p178 = scmp.ne.s32.totalorder %s166, %s167
      %p179 = scmp.eq.s32.totalorder %s26, 1
      %p180 = por %p178, %p179
      %p182 = scmp.ne.s32.totalorder %s167, %s181
      %p183 = scmp.eq.s32.totalorder %s26, 0
      %p184 = por %p182, %p183
      %s186 = sadd.s32 %s185, 1
      %p189 = scmp.eq.s32.totalorder %s20, 1
      %p190 = scmp.ne.s32.totalorder %s185, %s187
      %p191 = scmp.eq.s32.totalorder %s20, 0
      %p192 = por %p190, %p191
      %p193 = scmp.ne.s32.totalorder %s185, %s187
      %p194 = scmp.eq.s32.totalorder %s25, 1
      %p195 = por %p193, %p194
      %p196 = scmp.ne.s32.totalorder %s187, %s188
      %p197 = scmp.eq.s32.totalorder %s25, 0
      %p198 = por %p196, %p197
      %p199 = scmp.ne.s32.totalorder %s187, %s188
      %p200 = scmp.eq.s32.totalorder %s26, 1
      %p201 = por %p199, %p200
      %p203 = scmp.ne.s32.totalorder %s188, %s202
      %p204 = scmp.eq.s32.totalorder %s26, 0
      %p205 = por %p203, %p204
      %s206 = ssub.s32 %s20, %s27
      %p207 = scmp.eq.s32.totalorder %s206, 0
      %s209 = sadd.s32 %s208, 1
      %s210 = scalar_select %p207, %s208, %s209
      %p213 = pneg %p207
      %p214 = scmp.eq.s32.totalorder %s20, 1
      %p215 = por %p213, %p214
      %p216 = scmp.ne.s32.totalorder %s208, %s211
      %p217 = scmp.eq.s32.totalorder %s20, 0
      %p218 = por %p216, %p217
      %p219 = scmp.ne.s32.totalorder %s208, %s211
      %p220 = scmp.eq.s32.totalorder %s25, 1
      %p221 = por %p219, %p220
      %p222 = scmp.ne.s32.totalorder %s211, %s212
      %p223 = scmp.eq.s32.totalorder %s25, 0
      %p224 = por %p222, %p223
      %p225 = scmp.ne.s32.totalorder %s211, %s212
      %p226 = scmp.eq.s32.totalorder %s26, 1
      %p227 = por %p225, %p226
      %p229 = scmp.ne.s32.totalorder %s212, %s228
      %p230 = scmp.eq.s32.totalorder %s26, 0
      %p231 = por %p229, %p230
      %s232 = ssub.s32 %s20, %s27
      %p233 = scmp.eq.s32.totalorder %s232, 0
      %s235 = sadd.s32 %s234, 1
      %s236 = scalar_select %p233, %s234, %s235
      %p239 = pneg %p233
      %p240 = scmp.eq.s32.totalorder %s20, 1
      %p241 = por %p239, %p240
      %p242 = scmp.ne.s32.totalorder %s234, %s237
      %p243 = scmp.eq.s32.totalorder %s20, 0
      %p244 = por %p242, %p243
      %p245 = scmp.ne.s32.totalorder %s234, %s237
      %p246 = scmp.eq.s32.totalorder %s25, 1
      %p247 = por %p245, %p246
      %p248 = scmp.ne.s32.totalorder %s237, %s238
      %p249 = scmp.eq.s32.totalorder %s25, 0
      %p250 = por %p248, %p249
      %p251 = scmp.ne.s32.totalorder %s237, %s238
      %p252 = scmp.eq.s32.totalorder %s26, 1
      %p253 = por %p251, %p252
      %p255 = scmp.ne.s32.totalorder %s238, %s254
      %p256 = scmp.eq.s32.totalorder %s26, 0
      %p257 = por %p255, %p256
      %p258 = scmp.le.s32.totalorder 1, %s20
      %p259 = scmp.lt.s32.totalorder %s20, 3
      %p260 = pnand %p258, %p259
      %p261 = pneg %p260
      // Predicated region
      $region9: #{tpu_custom_call.1} parent=5 // pred_check
        _
      $region10: #{tpu_custom_call.1} parent=5 // pred_check_branch
        %263 = sbr.rel (%p260) target = $region12
      $region11: #{tpu_custom_call.1} parent=5 // pred_region
        %s264 = ssub.s32 %s20, 1
        // Predicated region
        $region13: #{tpu_custom_call.1} parent=11 // pred_check
          %p265 = pneg %p93
        $region14: #{tpu_custom_call.1} parent=11 // pred_check_branch
          %267 = sbr.rel (%p265) target = $region16
        $region15: #{tpu_custom_call.1} parent=11 // pred_region
          _
        $region16: #{tpu_custom_call.1} parent=11 // pred_fallthru
          _
        // Predicated region
        $region17: #{tpu_custom_call.1} parent=11 // pred_check
          %p268 = pneg %p114
        $region18: #{tpu_custom_call.1} parent=11 // pred_check_branch
          %270 = sbr.rel (%p268) target = $region20
        $region19: #{tpu_custom_call.1} parent=11 // pred_region
          _
        $region20: #{tpu_custom_call.1} parent=11 // pred_fallthru
          _
        // Predicated region
        $region21: #{tpu_custom_call.1} parent=11 // pred_check
          %p271 = pneg %p135
        $region22: #{tpu_custom_call.1} parent=11 // pred_check_branch
          %273 = sbr.rel (%p271) target = $region24
        $region23: #{tpu_custom_call.1} parent=11 // pred_region
          %s275 = ssub.s32 4096, 4096
          %276 = vsyncadd [#allocation3], %s275
          %s277 = sshll.u32 [#allocation2], 4
          %s278 = int_to_ptr.vmem [resolvable:$true] %s277
          %283 = dma.hbm_to_vmem [thread:$0]  %s4, 4096, %s278, [#allocation3], 128, 128, 8
        $region24: #{tpu_custom_call.1} parent=11 // pred_fallthru
          _
        // Predicated region
        $region25: #{tpu_custom_call.1} parent=11 // pred_check
          %p284 = pneg %p156
        $region26: #{tpu_custom_call.1} parent=11 // pred_check_branch
          %286 = sbr.rel (%p284) target = $region28
        $region27: #{tpu_custom_call.1} parent=11 // pred_region
          _
        $region28: #{tpu_custom_call.1} parent=11 // pred_fallthru
          _
        // Predicated region
        $region29: #{tpu_custom_call.1} parent=11 // pred_check
          %p287 = pneg %p177
        $region30: #{tpu_custom_call.1} parent=11 // pred_check_branch
          %289 = sbr.rel (%p287) target = $region32
        $region31: #{tpu_custom_call.1} parent=11 // pred_region
          _
        $region32: #{tpu_custom_call.1} parent=11 // pred_fallthru
          _
        // Predicated region
        $region33: #{tpu_custom_call.1} parent=11 // pred_check
          %p290 = pneg %p198
        $region34: #{tpu_custom_call.1} parent=11 // pred_check_branch
          %292 = sbr.rel (%p290) target = $region36
        $region35: #{tpu_custom_call.1} parent=11 // pred_region
          _
        $region36: #{tpu_custom_call.1} parent=11 // pred_fallthru
          _
      $region12: #{tpu_custom_call.1} parent=5 // pred_fallthru
        _
      %p293 = scmp.lt.s32.totalorder %s20, 2
      // Predicated region
      $region37: #{tpu_custom_call.1} parent=5 // pred_check
        %p294 = pneg %p293
      $region38: #{tpu_custom_call.1} parent=5 // pred_check_branch
        %296 = sbr.rel (%p294) target = $region40
      $region39: #{tpu_custom_call.1} parent=5 // pred_region
        // Predicated region
        $region41: #{tpu_custom_call.1} parent=39 // pred_check
          %p297 = pneg %p40
        $region42: #{tpu_custom_call.1} parent=39 // pred_check_branch
          %299 = sbr.rel (%p297) target = $region44
        $region43: #{tpu_custom_call.1} parent=39 // pred_region
          %s300 = smul.u32 2, %s20
          %p301 = scmp.lt.s32.totalorder %s300, 3
          %s302 = scalar_select %p301, %s300, 3
          %s303 = smul.addr %s302, 8
          %s304 = scalar_lea.vmem %s0, %s303
          %s305 = smul.u32 2, %s20
        $region44: #{tpu_custom_call.1} parent=39 // pred_fallthru
          _
        // Predicated region
        $region45: #{tpu_custom_call.1} parent=39 // pred_check
          %p306 = pneg %p66
        $region46: #{tpu_custom_call.1} parent=39 // pred_check_branch
          %308 = sbr.rel (%p306) target = $region48
        $region47: #{tpu_custom_call.1} parent=39 // pred_region
          %s309 = smul.u32 2, %s20
          %p310 = scmp.lt.s32.totalorder %s309, 3
          %s311 = scalar_select %p310, %s309, 3
          %s312 = smul.addr %s311, 8
          %s313 = scalar_lea.vmem %s1, %s312
          %s314 = smul.u32 2, %s20
        $region48: #{tpu_custom_call.1} parent=39 // pred_fallthru
          _
      $region40: #{tpu_custom_call.1} parent=5 // pred_fallthru
        _
      %p315 = scmp.le.s32.totalorder 1, %s20
      %p316 = scmp.lt.s32.totalorder %s20, 3
      %p317 = pnand %p315, %p316
      %p318 = pneg %p317
      // Predicated region
      $region49: #{tpu_custom_call.1} parent=5 // pred_check
        _
      $region50: #{tpu_custom_call.1} parent=5 // pred_check_branch
        %320 = sbr.rel (%p317) target = $region52
      $region51: #{tpu_custom_call.1} parent=5 // pred_region
        %s321 = ssub.s32 %s20, 1
        // Predicated region
        $region53: #{tpu_custom_call.1} parent=51 // pred_check
          %p322 = pneg %p135
        $region54: #{tpu_custom_call.1} parent=51 // pred_check_branch
          %324 = sbr.rel (%p322) target = $region56
        $region55: #{tpu_custom_call.1} parent=51 // pred_region
          %325 = dma.done [#allocation3], 4096
        $region56: #{tpu_custom_call.1} parent=51 // pred_fallthru
          _
        %s326 = smul.u32 2, %s25
        %p327 = scmp.lt.s32.totalorder %s326, 3
        %s328 = scalar_select %p327, %s326, 3
        %s329 = smul.addr %s328, 8
        %s330 = scalar_lea.vmem %s0, %s329
        %p331 = pneg %p46
        %p332 = pneg %p43
        %s333 = smul.u32 2, %s25
        %p334 = scmp.lt.s32.totalorder %s333, 3
        %s335 = scalar_select %p334, %s333, 3
        %s336 = smul.addr %s335, 8
        %s337 = scalar_lea.vmem %s1, %s336
        %p338 = pneg %p72
        %p339 = pneg %p69
        %p340 = pneg %p93
        %p341 = pneg %p90
        %p342 = pneg %p114
        %p343 = pneg %p111
        %p344 = pneg %p135
        %p345 = pneg %p132
        %p346 = pneg %p156
        %p347 = pneg %p153
        %p348 = pneg %p177
        %p349 = pneg %p174
        %p350 = pneg %p198
        %p351 = pneg %p195
        %p352 = pneg %p224
        %p353 = pneg %p221
        %s354 = sand.u32 %s211, 1
        %s355 = scalar_lea.sflag [#allocation4], %s354
        %s356 = sand.u32 %s211, 1
        %s357 = smul.addr %s356, 16
        %s358 = scalar_lea.vmem [#allocation5], %s357
        %p359 = pneg %p250
        %p360 = pneg %p247
        %s361 = smul.u32 2, %s25
        %p362 = scmp.lt.s32.totalorder %s361, 3
        %s363 = scalar_select %p362, %s361, 3
        %s364 = smul.addr %s363, 8
        %s365 = scalar_lea.vmem %s9, %s364
        %s366 = smul.u32 2, %s25
        %p367 = scmp.lt.s32.totalorder %s366, 3
        %s368 = scalar_select %p367, %s366, 3
        %s369 = smul.addr %s368, 8
        %s370 = scalar_lea.vmem %s0, %s369
        %s371 = smul.u32 2, %s25
        %s372 = smul.u32 2, %s25
        %p373 = scmp.lt.s32.totalorder %s372, 3
        %s374 = scalar_select %p373, %s372, 3
        %s375 = smul.addr %s374, 8
        %s376 = scalar_lea.vmem %s1, %s375
        %s377 = smul.u32 2, %s25
        %s378 = smul.u32 2, %s25
        %s379 = smul.u32 2, %s25
        %p380 = scmp.lt.s32.totalorder %s379, 3
        %s381 = scalar_select %p380, %s379, 3
        %s382 = smul.addr %s381, 8
        %s383 = scalar_lea.vmem %s9, %s382
        %s384 = smul.u32 2, %s25
        %v385 = vld [vmem:[%s370] sm:$0xff]
        %v386 = vld [vmem:[%s370 + $0x8] sm:$0xff]
        %v387 = vld [vmem:[%s376] sm:$0xff]
        %v388 = vld [vmem:[%s376 + $0x8] sm:$0xff]
        %v389 = vmul.f32 %v387, %v387
        %v390 = vmul.f32 %v388, %v388
        %v391 = vld [vmem:[%s2] sm:$0xff]
        %v392 = vld [vmem:[%s2 + $0x8] sm:$0xff]
        %v393 = vld [vmem:[%s2 + $0x10] sm:$0xff]
        %v394 = vld [vmem:[%s2 + $0x18] sm:$0xff]
        %vm395 = vcmask 130048
        %v397 = vsel %vm395, %v385, 0
        %v400 = vsel %vm395, %v386, 0
        %402 = vmatprep.subr.mxu0 %v392
        %403 = vmatpush1.msra.mxu0 %v391
        %404 = vmatprep.subr.mxu0 %v394
        %405 = vmatpush1.msra.mxu0 %v393
        %406 = vmatprep.subr.mxu0 0.0
        %407 = vmatpush1.msra.mxu0 0.0
        %408 = vmatprep.subr.mxu0 0.0
        %409 = vmatpush1.msra.mxu0 0.0
        %410 = vmatprep.subr.mxu0 0.0
        %411 = vmatpush1.msra.mxu0 0.0
        %412 = vmatprep.subr.mxu0 0.0
        %413 = vmatpush1.msra.mxu0 0.0
        %414 = vmatprep.subr.mxu0 0.0
        %415 = vmatpush1.msra.mxu0 0.0
        %416 = vmatprep.subr.mxu0 0.0
        %417 = vmatpush1.msra.mxu0 0.0
        %418 = vmatprep.subr.mxu0 0.0
        %419 = vmatpush1.msra.mxu0 0.0
        %420 = vmatprep.subr.mxu0 0.0
        %421 = vmatpush1.msra.mxu0 0.0
        %422 = vmatprep.subr.mxu0 0.0
        %423 = vmatpush1.msra.mxu0 0.0
        %424 = vmatprep.subr.mxu0 0.0
        %425 = vmatpush1.msra.mxu0 0.0
        %426 = vmatprep.subr.mxu0 0.0
        %427 = vmatpush1.msra.mxu0 0.0
        %428 = vmatprep.subr.mxu0 0.0
        %429 = vmatpush1.msra.mxu0 0.0
        %430 = vmatprep.subr.mxu0 0.0
        %431 = vmatpush1.msra.mxu0 0.0
        %432 = vmatprep.subr.mxu0 0.0
        %433 = vmatpush1.msra.mxu0 0.0
        %434 = vmatprep.subr.mxu0 0.0
        %435 = vmatpush1.msra.mxu0 0.0
        %436 = vmatprep.subr.mxu0 0.0
        %437 = vmatpush1.msra.mxu0 0.0
        %438 = vmatprep.subr.mxu0 0.0
        %439 = vmatpush1.msra.mxu0 0.0
        %440 = vmatprep.subr.mxu0 0.0
        %441 = vmatpush1.msra.mxu0 0.0
        %442 = vmatprep.subr.mxu0 0.0
        %443 = vmatpush1.msra.mxu0 0.0
        %444 = vmatprep.subr.mxu0 0.0
        %445 = vmatpush1.msra.mxu0 0.0
        %446 = vmatprep.subr.mxu0 0.0
        %447 = vmatpush1.msra.mxu0 0.0
        %448 = vmatprep.subr.mxu0 0.0
        %449 = vmatpush1.msra.mxu0 0.0
        %450 = vmatprep.subr.mxu0 0.0
        %451 = vmatpush1.msra.mxu0 0.0
        %452 = vmatprep.subr.mxu0 0.0
        %453 = vmatpush1.msra.mxu0 0.0
        %454 = vmatprep.subr.mxu0 0.0
        %455 = vmatpush1.msra.mxu0 0.0
        %456 = vmatprep.subr.mxu0 0.0
        %457 = vmatpush1.msra.mxu0 0.0
        %458 = vmatprep.subr.mxu0 0.0
        %459 = vmatpush1.msra.mxu0 0.0
        %460 = vmatprep.subr.mxu0 0.0
        %461 = vmatpush1.msra.mxu0 0.0
        %462 = vmatprep.subr.mxu0 0.0
        %463 = vmatpush1.msra.mxu0 0.0
        %464 = vmatprep.subr.mxu0 0.0
        %465 = vmatpush1.msra.mxu0 0.0
        %466 = vmatprep.mubr.f32.mxu0 0.0
        %467 = vmatmul.mubr.f32.gmra.mrb[0].mxu0 %v397
        %v468 = vpop.f32.mrb[0].mxu0
        %v469 = vadd.f32 0.0, %v468
        %v470 = vpop.f32.mrb[0].mxu0
        %v471 = vadd.f32 0.0, %v470
        %472 = vmatprep.mubr.f32.mxu0 0.0
        %473 = vmatmul.mubr.f32.gmra.mrb[0].mxu0 %v400
        %v474 = vpop.f32.mrb[0].mxu0
        %v475 = vadd.f32 0.0, %v474
        %v476 = vpop.f32.mrb[0].mxu0
        %v477 = vadd.f32 0.0, %v476
        %478 = vdwg.mxu0
        %v479 = vld [vmem:[%s3] sm:$0xff]
        %v480 = vld [vmem:[%s3 + $0x8] sm:$0xff]
        %v481 = vld [vmem:[%s3 + $0x10] sm:$0xff]
        %v482 = vld [vmem:[%s3 + $0x18] sm:$0xff]
        %483 = vmatprep.subr.mxu0 %v480
        %484 = vmatpush1.msra.mxu0 %v479
        %485 = vmatprep.subr.mxu0 %v482
        %486 = vmatpush1.msra.mxu0 %v481
        %487 = vmatprep.subr.mxu0 0.0
        %488 = vmatpush1.msra.mxu0 0.0
        %489 = vmatprep.subr.mxu0 0.0
        %490 = vmatpush1.msra.mxu0 0.0
        %491 = vmatprep.subr.mxu0 0.0
        %492 = vmatpush1.msra.mxu0 0.0
        %493 = vmatprep.subr.mxu0 0.0
        %494 = vmatpush1.msra.mxu0 0.0
        %495 = vmatprep.subr.mxu0 0.0
        %496 = vmatpush1.msra.mxu0 0.0
        %497 = vmatprep.subr.mxu0 0.0
        %498 = vmatpush1.msra.mxu0 0.0
        %499 = vmatprep.subr.mxu0 0.0
        %500 = vmatpush1.msra.mxu0 0.0
        %501 = vmatprep.subr.mxu0 0.0
        %502 = vmatpush1.msra.mxu0 0.0
        %503 = vmatprep.subr.mxu0 0.0
        %504 = vmatpush1.msra.mxu0 0.0
        %505 = vmatprep.subr.mxu0 0.0
        %506 = vmatpush1.msra.mxu0 0.0
        %507 = vmatprep.subr.mxu0 0.0
        %508 = vmatpush1.msra.mxu0 0.0
        %509 = vmatprep.subr.mxu0 0.0
        %510 = vmatpush1.msra.mxu0 0.0
        %511 = vmatprep.subr.mxu0 0.0
        %512 = vmatpush1.msra.mxu0 0.0
        %513 = vmatprep.subr.mxu0 0.0
        %514 = vmatpush1.msra.mxu0 0.0
        %515 = vmatprep.subr.mxu0 0.0
        %516 = vmatpush1.msra.mxu0 0.0
        %517 = vmatprep.subr.mxu0 0.0
        %518 = vmatpush1.msra.mxu0 0.0
        %519 = vmatprep.subr.mxu0 0.0
        %520 = vmatpush1.msra.mxu0 0.0
        %521 = vmatprep.subr.mxu0 0.0
        %522 = vmatpush1.msra.mxu0 0.0
        %523 = vmatprep.subr.mxu0 0.0
        %524 = vmatpush1.msra.mxu0 0.0
        %525 = vmatprep.subr.mxu0 0.0
        %526 = vmatpush1.msra.mxu0 0.0
        %527 = vmatprep.subr.mxu0 0.0
        %528 = vmatpush1.msra.mxu0 0.0
        %529 = vmatprep.subr.mxu0 0.0
        %530 = vmatpush1.msra.mxu0 0.0
        %531 = vmatprep.subr.mxu0 0.0
        %532 = vmatpush1.msra.mxu0 0.0
        %533 = vmatprep.subr.mxu0 0.0
        %534 = vmatpush1.msra.mxu0 0.0
        %535 = vmatprep.subr.mxu0 0.0
        %536 = vmatpush1.msra.mxu0 0.0
        %537 = vmatprep.subr.mxu0 0.0
        %538 = vmatpush1.msra.mxu0 0.0
        %539 = vmatprep.subr.mxu0 0.0
        %540 = vmatpush1.msra.mxu0 0.0
        %541 = vmatprep.subr.mxu0 0.0
        %542 = vmatpush1.msra.mxu0 0.0
        %543 = vmatprep.subr.mxu0 0.0
        %544 = vmatpush1.msra.mxu0 0.0
        %545 = vmatprep.subr.mxu0 0.0
        %546 = vmatpush1.msra.mxu0 0.0
        %547 = vmatprep.mubr.f32.mxu0 0.0
        %548 = vmatmul.mubr.f32.gmra.mrb[0].mxu0 %v397
        %v549 = vpop.f32.mrb[0].mxu0
        %v550 = vadd.f32 0.0, %v549
        %v551 = vpop.f32.mrb[0].mxu0
        %v552 = vadd.f32 0.0, %v551
        %553 = vmatprep.mubr.f32.mxu0 0.0
        %554 = vmatmul.mubr.f32.gmra.mrb[0].mxu0 %v400
        %v555 = vpop.f32.mrb[0].mxu0
        %v556 = vadd.f32 0.0, %v555
        %v557 = vpop.f32.mrb[0].mxu0
        %v558 = vadd.f32 0.0, %v557
        %559 = vdwg.mxu0
        %v560 = vmul.f32 %v469, %v550
        %v561 = vmul.f32 %v471, %v552
        %v562 = vmul.f32 %v475, %v556
        %v563 = vmul.f32 %v477, %v558
        %v564 = vld [vmem:[#allocation2] sm:$0xff]
        %v565 = vld [vmem:[#allocation2 + $0x8] sm:$0xff]
        %v566 = vld [vmem:[#allocation2 + $0x10] sm:$0xff]
        %v567 = vld [vmem:[#allocation2 + $0x18] sm:$0xff]
        %v568 = vld [vmem:[#allocation2 + $0x20] sm:$0xff]
        %v569 = vld [vmem:[#allocation2 + $0x28] sm:$0xff]
        %v570 = vld [vmem:[#allocation2 + $0x30] sm:$0xff]
        %v571 = vld [vmem:[#allocation2 + $0x38] sm:$0xff]
        %v572 = vld [vmem:[#allocation2 + $0x40] sm:$0xff]
        %v573 = vld [vmem:[#allocation2 + $0x48] sm:$0xff]
        %v574 = vld [vmem:[#allocation2 + $0x50] sm:$0xff]
        %v575 = vld [vmem:[#allocation2 + $0x58] sm:$0xff]
        %v576 = vld [vmem:[#allocation2 + $0x60] sm:$0xff]
        %v577 = vld [vmem:[#allocation2 + $0x68] sm:$0xff]
        %v578 = vld [vmem:[#allocation2 + $0x70] sm:$0xff]
        %v579 = vld [vmem:[#allocation2 + $0x78] sm:$0xff]
        %v580 = vld [vmem:[#allocation2 + $0x80] sm:$0xff]
        %v581 = vld [vmem:[#allocation2 + $0x88] sm:$0xff]
        %v582 = vld [vmem:[#allocation2 + $0x90] sm:$0xff]
        %v583 = vld [vmem:[#allocation2 + $0x98] sm:$0xff]
        %v584 = vld [vmem:[#allocation2 + $0xa0] sm:$0xff]
        %v585 = vld [vmem:[#allocation2 + $0xa8] sm:$0xff]
        %v586 = vld [vmem:[#allocation2 + $0xb0] sm:$0xff]
        %v587 = vld [vmem:[#allocation2 + $0xb8] sm:$0xff]
        %v588 = vld [vmem:[#allocation2 + $0xc0] sm:$0xff]
        %v589 = vld [vmem:[#allocation2 + $0xc8] sm:$0xff]
        %v590 = vld [vmem:[#allocation2 + $0xd0] sm:$0xff]
        %v591 = vld [vmem:[#allocation2 + $0xd8] sm:$0xff]
        %v592 = vld [vmem:[#allocation2 + $0xe0] sm:$0xff]
        %v593 = vld [vmem:[#allocation2 + $0xe8] sm:$0xff]
        %v594 = vld [vmem:[#allocation2 + $0xf0] sm:$0xff]
        %v595 = vld [vmem:[#allocation2 + $0xf8] sm:$0xff]
        %v596 = vld [vmem:[%s5] sm:$0xff]
        %v597 = vld [vmem:[%s5 + $0x8] sm:$0xff]
        %598 = vmatprep.subr.mxu0 0.0
        %599 = vmatpush1.msra.mxu0 %v596
        %600 = vmatprep.subr.mxu0 0.0
        %601 = vmatpush1.msra.mxu0 %v597
        %602 = vmatprep.subr.mxu0 0.0
        %603 = vmatpush1.msra.mxu0 0.0
        %604 = vmatprep.subr.mxu0 0.0
        %605 = vmatpush1.msra.mxu0 0.0
        %606 = vmatprep.subr.mxu0 0.0
        %607 = vmatpush1.msra.mxu0 0.0
        %608 = vmatprep.subr.mxu0 0.0
        %609 = vmatpush1.msra.mxu0 0.0
        %610 = vmatprep.subr.mxu0 0.0
        %611 = vmatpush1.msra.mxu0 0.0
        %612 = vmatprep.subr.mxu0 0.0
        %613 = vmatpush1.msra.mxu0 0.0
        %614 = vmatprep.subr.mxu0 0.0
        %615 = vmatpush1.msra.mxu0 0.0
        %616 = vmatprep.subr.mxu0 0.0
        %617 = vmatpush1.msra.mxu0 0.0
        %618 = vmatprep.subr.mxu0 0.0
        %619 = vmatpush1.msra.mxu0 0.0
        %620 = vmatprep.subr.mxu0 0.0
        %621 = vmatpush1.msra.mxu0 0.0
        %622 = vmatprep.subr.mxu0 0.0
        %623 = vmatpush1.msra.mxu0 0.0
        %624 = vmatprep.subr.mxu0 0.0
        %625 = vmatpush1.msra.mxu0 0.0
        %626 = vmatprep.subr.mxu0 0.0
        %627 = vmatpush1.msra.mxu0 0.0
        %628 = vmatprep.subr.mxu0 0.0
        %629 = vmatpush1.msra.mxu0 0.0
        %630 = vmatprep.subr.mxu0 0.0
        %631 = vmatpush1.msra.mxu0 0.0
        %632 = vmatprep.subr.mxu0 0.0
        %633 = vmatpush1.msra.mxu0 0.0
        %634 = vmatprep.subr.mxu0 0.0
        %635 = vmatpush1.msra.mxu0 0.0
        %636 = vmatprep.subr.mxu0 0.0
        %637 = vmatpush1.msra.mxu0 0.0
        %638 = vmatprep.subr.mxu0 0.0
        %639 = vmatpush1.msra.mxu0 0.0
        %640 = vmatprep.subr.mxu0 0.0
        %641 = vmatpush1.msra.mxu0 0.0
        %642 = vmatprep.subr.mxu0 0.0
        %643 = vmatpush1.msra.mxu0 0.0
        %644 = vmatprep.subr.mxu0 0.0
        %645 = vmatpush1.msra.mxu0 0.0
        %646 = vmatprep.subr.mxu0 0.0
        %647 = vmatpush1.msra.mxu0 0.0
        %648 = vmatprep.subr.mxu0 0.0
        %649 = vmatpush1.msra.mxu0 0.0
        %650 = vmatprep.subr.mxu0 0.0
        %651 = vmatpush1.msra.mxu0 0.0
        %652 = vmatprep.subr.mxu0 0.0
        %653 = vmatpush1.msra.mxu0 0.0
        %654 = vmatprep.subr.mxu0 0.0
        %655 = vmatpush1.msra.mxu0 0.0
        %656 = vmatprep.subr.mxu0 0.0
        %657 = vmatpush1.msra.mxu0 0.0
        %658 = vmatprep.subr.mxu0 0.0
        %659 = vmatpush1.msra.mxu0 0.0
        %660 = vmatprep.subr.mxu0 0.0
        %661 = vmatpush1.msra.mxu0 0.0
        %662 = vmatprep.mubr.f32.mxu0 0.0
        %663 = vmatmul.mubr.f32.gmra.mrb[0].mxu0 %v397
        %v664 = vpop.f32.mrb[0].mxu0
        %v665 = vadd.f32 0.0, %v664
        %v666 = vpop.f32.mrb[0].mxu0
        %667 = vmatprep.mubr.f32.mxu0 0.0
        %668 = vmatmul.mubr.f32.gmra.mrb[0].mxu0 %v400
        %v669 = vpop.f32.mrb[0].mxu0
        %v670 = vadd.f32 0.0, %v669
        %v671 = vpop.f32.mrb[0].mxu0
        %672 = vdwg.mxu0
        %673 = vmatprep.subr.mxu0 0.0
        %674 = vmatpush1.msra.mxu0 %v564
        %675 = vmatprep.subr.mxu0 0.0
        %676 = vmatpush1.msra.mxu0 %v565
        %677 = vmatprep.subr.mxu0 0.0
        %678 = vmatpush1.msra.mxu0 %v566
        %679 = vmatprep.subr.mxu0 0.0
        %680 = vmatpush1.msra.mxu0 %v567
        %681 = vmatprep.subr.mxu0 0.0
        %682 = vmatpush1.msra.mxu0 %v568
        %683 = vmatprep.subr.mxu0 0.0
        %684 = vmatpush1.msra.mxu0 %v569
        %685 = vmatprep.subr.mxu0 0.0
        %686 = vmatpush1.msra.mxu0 %v570
        %687 = vmatprep.subr.mxu0 0.0
        %688 = vmatpush1.msra.mxu0 %v571
        %689 = vmatprep.subr.mxu0 0.0
        %690 = vmatpush1.msra.mxu0 %v572
        %691 = vmatprep.subr.mxu0 0.0
        %692 = vmatpush1.msra.mxu0 %v573
        %693 = vmatprep.subr.mxu0 0.0
        %694 = vmatpush1.msra.mxu0 %v574
        %695 = vmatprep.subr.mxu0 0.0
        %696 = vmatpush1.msra.mxu0 %v575
        %697 = vmatprep.subr.mxu0 0.0
        %698 = vmatpush1.msra.mxu0 %v576
        %699 = vmatprep.subr.mxu0 0.0
        %700 = vmatpush1.msra.mxu0 %v577
        %701 = vmatprep.subr.mxu0 0.0
        %702 = vmatpush1.msra.mxu0 %v578
        %703 = vmatprep.subr.mxu0 0.0
        %704 = vmatpush1.msra.mxu0 %v579
        %705 = vmatprep.subr.mxu0 0.0
        %706 = vmatpush1.msra.mxu0 %v580
        %707 = vmatprep.subr.mxu0 0.0
        %708 = vmatpush1.msra.mxu0 %v581
        %709 = vmatprep.subr.mxu0 0.0
        %710 = vmatpush1.msra.mxu0 %v582
        %711 = vmatprep.subr.mxu0 0.0
        %712 = vmatpush1.msra.mxu0 %v583
        %713 = vmatprep.subr.mxu0 0.0
        %714 = vmatpush1.msra.mxu0 %v584
        %715 = vmatprep.subr.mxu0 0.0
        %716 = vmatpush1.msra.mxu0 %v585
        %717 = vmatprep.subr.mxu0 0.0
        %718 = vmatpush1.msra.mxu0 %v586
        %719 = vmatprep.subr.mxu0 0.0
        %720 = vmatpush1.msra.mxu0 %v587
        %721 = vmatprep.subr.mxu0 0.0
        %722 = vmatpush1.msra.mxu0 %v588
        %723 = vmatprep.subr.mxu0 0.0
        %724 = vmatpush1.msra.mxu0 %v589
        %725 = vmatprep.subr.mxu0 0.0
        %726 = vmatpush1.msra.mxu0 %v590
        %727 = vmatprep.subr.mxu0 0.0
        %728 = vmatpush1.msra.mxu0 %v591
        %729 = vmatprep.subr.mxu0 0.0
        %730 = vmatpush1.msra.mxu0 %v592
        %731 = vmatprep.subr.mxu0 0.0
        %732 = vmatpush1.msra.mxu0 %v593
        %733 = vmatprep.subr.mxu0 0.0
        %734 = vmatpush1.msra.mxu0 %v594
        %735 = vmatprep.subr.mxu0 0.0
        %736 = vmatpush1.msra.mxu0 %v595
        %737 = vmatprep.mubr.f32.mxu0 %v561
        %738 = vmatmul.mubr.f32.gmra.mrb[0].mxu0 %v560
        %v739 = vpop.f32.mrb[0].mxu0
        %v740 = vadd.f32 %v665, %v739
        %v741 = vpop.f32.mrb[0].mxu0
        %742 = vmatprep.mubr.f32.mxu0 %v563
        %743 = vmatmul.mubr.f32.gmra.mrb[0].mxu0 %v562
        %v744 = vpop.f32.mrb[0].mxu0
        %v745 = vadd.f32 %v670, %v744
        %v746 = vpop.f32.mrb[0].mxu0
        %747 = vdwg.mxu0
        %v748 = vld [vmem:[%s6] sm:$0xff]
        %v749 = vld [vmem:[%s6 + $0x8] sm:$0xff]
        %v751 = vsel %vm395, %v389, 0
        %v754 = vsel %vm395, %v390, 0
        %756 = vmatprep.subr.mxu0 0.0
        %757 = vmatpush1.msra.mxu0 %v748
        %758 = vmatprep.subr.mxu0 0.0
        %759 = vmatpush1.msra.mxu0 %v749
        %760 = vmatprep.subr.mxu0 0.0
        %761 = vmatpush1.msra.mxu0 0.0
        %762 = vmatprep.subr.mxu0 0.0
        %763 = vmatpush1.msra.mxu0 0.0
        %764 = vmatprep.subr.mxu0 0.0
        %765 = vmatpush1.msra.mxu0 0.0
        %766 = vmatprep.subr.mxu0 0.0
        %767 = vmatpush1.msra.mxu0 0.0
        %768 = vmatprep.subr.mxu0 0.0
        %769 = vmatpush1.msra.mxu0 0.0
        %770 = vmatprep.subr.mxu0 0.0
        %771 = vmatpush1.msra.mxu0 0.0
        %772 = vmatprep.subr.mxu0 0.0
        %773 = vmatpush1.msra.mxu0 0.0
        %774 = vmatprep.subr.mxu0 0.0
        %775 = vmatpush1.msra.mxu0 0.0
        %776 = vmatprep.subr.mxu0 0.0
        %777 = vmatpush1.msra.mxu0 0.0
        %778 = vmatprep.subr.mxu0 0.0
        %779 = vmatpush1.msra.mxu0 0.0
        %780 = vmatprep.subr.mxu0 0.0
        %781 = vmatpush1.msra.mxu0 0.0
        %782 = vmatprep.subr.mxu0 0.0
        %783 = vmatpush1.msra.mxu0 0.0
        %784 = vmatprep.subr.mxu0 0.0
        %785 = vmatpush1.msra.mxu0 0.0
        %786 = vmatprep.subr.mxu0 0.0
        %787 = vmatpush1.msra.mxu0 0.0
        %788 = vmatprep.subr.mxu0 0.0
        %789 = vmatpush1.msra.mxu0 0.0
        %790 = vmatprep.subr.mxu0 0.0
        %791 = vmatpush1.msra.mxu0 0.0
        %792 = vmatprep.subr.mxu0 0.0
        %793 = vmatpush1.msra.mxu0 0.0
        %794 = vmatprep.subr.mxu0 0.0
        %795 = vmatpush1.msra.mxu0 0.0
        %796 = vmatprep.subr.mxu0 0.0
        %797 = vmatpush1.msra.mxu0 0.0
        %798 = vmatprep.subr.mxu0 0.0
        %799 = vmatpush1.msra.mxu0 0.0
        %800 = vmatprep.subr.mxu0 0.0
        %801 = vmatpush1.msra.mxu0 0.0
        %802 = vmatprep.subr.mxu0 0.0
        %803 = vmatpush1.msra.mxu0 0.0
        %804 = vmatprep.subr.mxu0 0.0
        %805 = vmatpush1.msra.mxu0 0.0
        %806 = vmatprep.subr.mxu0 0.0
        %807 = vmatpush1.msra.mxu0 0.0
        %808 = vmatprep.subr.mxu0 0.0
        %809 = vmatpush1.msra.mxu0 0.0
        %810 = vmatprep.subr.mxu0 0.0
        %811 = vmatpush1.msra.mxu0 0.0
        %812 = vmatprep.subr.mxu0 0.0
        %813 = vmatpush1.msra.mxu0 0.0
        %814 = vmatprep.subr.mxu0 0.0
        %815 = vmatpush1.msra.mxu0 0.0
        %816 = vmatprep.subr.mxu0 0.0
        %817 = vmatpush1.msra.mxu0 0.0
        %818 = vmatprep.subr.mxu0 0.0
        %819 = vmatpush1.msra.mxu0 0.0
        %820 = vmatprep.mubr.f32.mxu0 0.0
        %821 = vmatmul.mubr.f32.gmra.mrb[0].mxu0 %v751
        %v822 = vpop.f32.mrb[0].mxu0
        %v823 = vadd.f32 0.0, %v822
        %v824 = vpop.f32.mrb[0].mxu0
        %825 = vmatprep.mubr.f32.mxu0 0.0
        %826 = vmatmul.mubr.f32.gmra.mrb[0].mxu0 %v754
        %v827 = vpop.f32.mrb[0].mxu0
        %v828 = vadd.f32 0.0, %v827
        %v829 = vpop.f32.mrb[0].mxu0
        %830 = vdwg.mxu0
        %v831 = vadd.f32 %v740, %v823
        %v832 = vadd.f32 %v745, %v828
        %v833 = vld [vmem:[%s7] sm:$0x1]
        %v835 = vlaneseq
        %v836 = vshrl.u32 %v835, 7
        %v837 = vsub.s32 0, %v836
        %v838 = vrot.slane %v833, %v837
        %v840 = vadd.f32 %v831, %v838
        %v841 = vadd.f32 %v832, %v838
        %v842 = vlog2.pop %v389
        %v843 = vmul.f32 %v842, 0.6931472
        %v844 = vlog2.pop %v390
        %v845 = vmul.f32 %v844, 0.6931472
        %v846 = vsel %vm395, %v843, 0.0
        %847 = vadd.xlane.f32.xlu0 %v846
        %v848 = vpop.xlane.xlu0 %847
        %v849 = vsel %vm395, %v845, 0.0
        %850 = vadd.xlane.f32.xlu0 %v849
        %v851 = vpop.xlane.xlu0 %850
        %v852 = vmul.f32 %v848, 0.5
        %v853 = vmul.f32 %v851, 0.5
        %v854 = vadd.f32 %v840, %v852
        %v855 = vadd.f32 %v841, %v853
        %856 = vst [vmem:[%s358] sm:$0xff] %v854
        %857 = vst [vmem:[%s358 + $0x8] sm:$0xff] %v855
        %858 = vmax.xlane.f32.xlu0 %v854
        %v859 = vpop.xlane.xlu0 %858
        %860 = vmax.xlane.f32.xlu0 %v855
        %v861 = vpop.xlane.xlu0 %860
        %v862 = vsub.f32 %v854, %v859
        %v863 = vsub.f32 %v855, %v861
        %v864 = vmul.f32 %v862, 1.442695
        %v865 = vpow.pop %v864
        %v866 = vmul.f32 %v863, 1.442695
        %v867 = vpow.pop %v866
        %868 = vadd.xlane.f32.xlu0 %v865
        %v869 = vpop.xlane.xlu0 %868
        %870 = vadd.xlane.f32.xlu0 %v867
        %v871 = vpop.xlane.xlu0 %870
        %v872 = vlog2.pop %v869
        %v873 = vmul.f32 %v872, 0.6931472
        %v874 = vlog2.pop %v871
        %v875 = vmul.f32 %v874, 0.6931472
        %v876 = vadd.f32 %v859, %v873
        %v877 = vadd.f32 %v861, %v875
        %vm878 = vcmask 7168
        %879 = vst.msk [vmem:[%s383] sm:$0xff] %vm878, %v876
        %880 = vst.msk [vmem:[%s383 + $0x8] sm:$0xff] %vm878, %v877
        %s881 = sand.u32 %s211, 1
        %s882 = scalar_lea.sflag [#allocation4], %s881
        %s883 = sand.u32 %s211, 1
        %s884 = smul.addr %s883, 16
        %s885 = scalar_lea.vmem [#allocation5], %s884
        %s886 = smul.u32 2, %s25
        %p887 = scmp.lt.s32.totalorder %s886, 3
        %s888 = scalar_select %p887, %s886, 3
        %s889 = smul.addr %s888, 8
        %s890 = scalar_lea.vmem %s9, %s889
        // Predicated region
        $region57: #{tpu_custom_call.1} parent=51 // pred_check
          %p891 = pneg %p221
        $region58: #{tpu_custom_call.1} parent=51 // pred_check_branch
          %893 = sbr.rel (%p891) target = $region60
        $region59: #{tpu_custom_call.1} parent=51 // pred_region
          %s894 = smul.u32 2, %s25
          %s896 = ssub.s32 256, 256
          %897 = vsyncadd %s882, %s896
          %s898 = smul.addr %s894, 128
          %s899 = scalar_lea.hbm %s8, %s898
          %s900 = sshll.u32 %s885, 4
          %s901 = int_to_ptr.vmem [resolvable:$true] %s900
          %906 = dma.vmem_to_hbm [thread:$0]  %s901, 256, %s899, %s882, 128, 128, 8
        $region60: #{tpu_custom_call.1} parent=51 // pred_fallthru
          _
        // Predicated region
        $region61: #{tpu_custom_call.1} parent=51 // pred_check
          %p907 = pneg %p247
        $region62: #{tpu_custom_call.1} parent=51 // pred_check_branch
          %909 = sbr.rel (%p907) target = $region64
        $region63: #{tpu_custom_call.1} parent=51 // pred_region
          %s910 = smul.u32 2, %s25
        $region64: #{tpu_custom_call.1} parent=51 // pred_fallthru
          _
      $region52: #{tpu_custom_call.1} parent=5 // pred_fallthru
        _
      %p911 = scmp.le.s32.totalorder 2, %s20
      // Predicated region
      $region65: #{tpu_custom_call.1} parent=5 // pred_check
        %p912 = pneg %p911
      $region66: #{tpu_custom_call.1} parent=5 // pred_check_branch
        %914 = sbr.rel (%p912) target = $region68
      $region67: #{tpu_custom_call.1} parent=5 // pred_region
        %s915 = ssub.s32 %s20, 2
        // Predicated region
        $region69: #{tpu_custom_call.1} parent=67 // pred_check
          %p916 = pneg %p227
        $region70: #{tpu_custom_call.1} parent=67 // pred_check_branch
          %918 = sbr.rel (%p916) target = $region72
        $region71: #{tpu_custom_call.1} parent=67 // pred_region
          %s919 = sand.u32 %s212, 1
          %s920 = scalar_lea.sflag [#allocation4], %s919
          %s921 = sand.u32 %s212, 1
          %s922 = smul.addr %s921, 16
          %s923 = scalar_lea.vmem [#allocation5], %s922
          %924 = dma.done %s920, 256
        $region72: #{tpu_custom_call.1} parent=67 // pred_fallthru
          _
        // Predicated region
        $region73: #{tpu_custom_call.1} parent=67 // pred_check
          %p925 = pneg %p253
        $region74: #{tpu_custom_call.1} parent=67 // pred_check_branch
          %927 = sbr.rel (%p925) target = $region76
        $region75: #{tpu_custom_call.1} parent=67 // pred_region
          %s928 = smul.u32 2, %s26
          %p929 = scmp.lt.s32.totalorder %s928, 3
          %s930 = scalar_select %p929, %s928, 3
          %s931 = smul.addr %s930, 8
          %s932 = scalar_lea.vmem %s9, %s931
        $region76: #{tpu_custom_call.1} parent=67 // pred_fallthru
          _
      $region68: #{tpu_custom_call.1} parent=5 // pred_fallthru
        _
    $region6: #{tpu_custom_call.1} parent=1 // loop_footer
      %s24 = sadd.s32 1, %s20
    $region7: #{tpu_custom_call.1} parent=1 // loop_footer_branch
      %19 = sbr.rel target = $region3
    $region8: #{tpu_custom_call.1} parent=1 // loop_exit
      _
    %933 = vsyncpa [#allocation3], 1
    %s934 = scalar_lea.sflag [#allocation3], 1
    %935 = vsyncpa %s934, 1
    %936 = vsyncpa [#allocation4], 1
    %s937 = scalar_lea.sflag [#allocation4], 1
    %938 = vsyncpa %s937, 1

</llo_original>
